<compile_context>
chip_gen: v7x
topology: tpu7x:2x2x1
jax: 0.10.0
libtpu: 0.0.40
codegen_flags: <defaults>
</compile_context>

<pallas_src>
import functools

import jax
import jax.numpy as jnp
from jax.experimental import pallas as pl
from jax.experimental.pallas import tpu as pltpu


_HEADROOM = 4 << 20          # pipeline / compiler scratch slack
_FALLBACK_VMEM = 64 << 20    # smallest per-core physical VMEM (v7x)


@functools.lru_cache(maxsize=None)
def _vmem_budget():
    """~75% of this generation's physical VMEM (~96 MiB v5e/v6e, ~48 MiB v7x)."""
    try:
        cap = int(pltpu.get_tpu_info().vmem_capacity_bytes)
    except Exception:
        cap = _FALLBACK_VMEM
    if cap <= 0:
        cap = _FALLBACK_VMEM
    return (cap * 3) // 4


def _choose_tk(m, kdim, fixed_acc_bytes):
    """Largest K tile (multiple of 128) so that 2 inputs x 2 pipeline buffers of
    (m, tk) f32 plus the accumulators fit in the generation VMEM budget.  Never
    larger than the array's K extent (no oversized blocks); the ragged last
    tile is masked in-kernel."""
    if kdim <= 128:
        return kdim                       # one full-width block (== array dim)
    per_col = 16 * m + 4                  # 2 inputs * 2 buffers * 4 B (+ L1 acc)
    avail = max(_vmem_budget() - fixed_acc_bytes - _HEADROOM, 2 << 20)
    tk = max(128, (int(avail // per_col) // 128) * 128)
    kmax = (kdim // 128) * 128            # keep block <= array extent
    return min(tk, kmax)


def _vmem_limit(m, tk, fixed_acc_bytes):
    needed = fixed_acc_bytes + (16 * m + 4) * tk + _HEADROOM
    return int(min(max(needed, 32 << 20), _vmem_budget()))


def _flatten(x):
    a, b, c, d = x.shape
    return x.reshape(a * b, c * d).astype(jnp.float32)


def _maybe_mask(fx, fy, kdim, tk, k):
    """Zero the lanes of the (ragged) last K tile beyond the true K extent.
    Compiles to nothing when tk divides K (static check)."""
    if kdim % tk == 0:
        return fx, fy
    col = jax.lax.broadcasted_iota(jnp.int32, fx.shape, 1)
    keep = col < (kdim - k * tk)
    return jnp.where(keep, fx, 0.0), jnp.where(keep, fy, 0.0)


# ----------------------------------------------------------------------------
# StyleLoss: mse(gram(x), gram(y)) * 3e7
# ----------------------------------------------------------------------------
def _style_kernel(fx_ref, fy_ref, o_ref, acc_ref, *, kdim, tk, scale, gram_dtype):
    k = pl.program_id(0)

    @pl.when(k == 0)
    def _():
        acc_ref[...] = jnp.zeros_like(acc_ref)

    fx, fy = _maybe_mask(fx_ref[...], fy_ref[...], kdim, tk, k)
    fx = fx.astype(gram_dtype)
    fy = fy.astype(gram_dtype)
    dn = (((1,), (1,)), ((), ()))     # contract last dims: F @ F^T, no transpose
    # Split +=/-= so only one (M, M) matmul result is live at a time.
    acc_ref[...] += jax.lax.dot_general(fx, fx, dn,
                                        preferred_element_type=jnp.float32)
    acc_ref[...] -= jax.lax.dot_general(fy, fy, dn,
                                        preferred_element_type=jnp.float32)

    @pl.when(k == pl.num_programs(0) - 1)
    def _():
        dmat = acc_ref[...]
        # Folds the Gram 1/N normalisation (squared), MSE 1/M^2 mean, 3e7 weight.
        o_ref[...] = jnp.sum(dmat * dmat, keepdims=True) * scale


def style_loss(x, y, *, gram_operand_dtype=jnp.float32):
    """StyleLoss.forward: F.mse_loss(gram(x), gram(y)) * 30000000 for NCHW x, y."""
    assert x.shape == y.shape
    a, b, c, d = x.shape
    m, kdim = a * b, c * d
    total = float(a * b * c * d)
    fx, fy = _flatten(x), _flatten(y)

    acc_bytes = m * m * 4
    tk = _choose_tk(m, kdim, acc_bytes)
    scale = (1.0 / total) ** 2 / float(m * m) * 30000000.0
    kernel = functools.partial(_style_kernel, kdim=kdim, tk=tk, scale=scale,
                               gram_dtype=gram_operand_dtype)

    out = pl.pallas_call(
        kernel,
        out_shape=jax.ShapeDtypeStruct((1, 1), jnp.float32),
        grid_spec=pltpu.PrefetchScalarGridSpec(
            num_scalar_prefetch=0,
            grid=(pl.cdiv(kdim, tk),),
            in_specs=[pl.BlockSpec((m, tk), lambda k: (0, k)),
                      pl.BlockSpec((m, tk), lambda k: (0, k))],
            out_specs=pl.BlockSpec((1, 1), lambda k: (0, 0)),
            scratch_shapes=[pltpu.VMEM((m, m), jnp.float32)],
        ),
        compiler_params=pltpu.CompilerParams(
            dimension_semantics=("arbitrary",),
            vmem_limit_bytes=_vmem_limit(m, tk, acc_bytes),
        ),
    )(fx, fy)
    return out[0, 0]


# ----------------------------------------------------------------------------
# L1 loss (nn.L1Loss(): mean absolute error)
# ----------------------------------------------------------------------------
def _l1_kernel(fx_ref, fy_ref, o_ref, acc_ref, *, kdim, tk, inv_n):
    k = pl.program_id(0)

    @pl.when(k == 0)
    def _():
        acc_ref[...] = jnp.zeros_like(acc_ref)

    fx, fy = _maybe_mask(fx_ref[...], fy_ref[...], kdim, tk, k)
    # Lane-parallel partial sums; single cross-lane reduce only on the last step.
    acc_ref[...] += jnp.sum(jnp.abs(fx - fy), axis=0, keepdims=True)

    @pl.when(k == pl.num_programs(0) - 1)
    def _():
        o_ref[...] = jnp.sum(acc_ref[...], keepdims=True) * inv_n


def l1_loss(x, y):
    """nn.L1Loss() (mean absolute error) for same-shape NCHW x, y."""
    assert x.shape == y.shape
    a, b, c, d = x.shape
    m, kdim = a * b, c * d
    n = float(a * b * c * d)
    fx, fy = _flatten(x), _flatten(y)

    acc_bytes = 4 * 128
    tk = _choose_tk(m, kdim, acc_bytes)
    kernel = functools.partial(_l1_kernel, kdim=kdim, tk=tk, inv_n=1.0 / n)

    out = pl.pallas_call(
        kernel,
        out_shape=jax.ShapeDtypeStruct((1, 1), jnp.float32),
        grid_spec=pltpu.PrefetchScalarGridSpec(
            num_scalar_prefetch=0,
            grid=(pl.cdiv(kdim, tk),),
            in_specs=[pl.BlockSpec((m, tk), lambda k: (0, k)),
                      pl.BlockSpec((m, tk), lambda k: (0, k))],
            out_specs=pl.BlockSpec((1, 1), lambda k: (0, 0)),
            scratch_shapes=[pltpu.VMEM((1, tk), jnp.float32)],
        ),
        compiler_params=pltpu.CompilerParams(
            dimension_semantics=("arbitrary",),
            vmem_limit_bytes=_vmem_limit(m, tk, acc_bytes),
        ),
    )(fx, fy)
    return out[0, 0]


# ----------------------------------------------------------------------------
# Fused L1 + StyleLoss: one streaming pass over (x, y) feeds both criteria
# ----------------------------------------------------------------------------
def _fused_kernel(fx_ref, fy_ref, l1_ref, style_ref, gram_ref, l1_acc_ref,
                  *, kdim, tk, inv_n, scale, gram_dtype):
    k = pl.program_id(0)

    @pl.when(k == 0)
    def _():
        gram_ref[...] = jnp.zeros_like(gram_ref)
        l1_acc_ref[...] = jnp.zeros_like(l1_acc_ref)

    fx, fy = _maybe_mask(fx_ref[...], fy_ref[...], kdim, tk, k)

    l1_acc_ref[...] += jnp.sum(jnp.abs(fx - fy), axis=0, keepdims=True)

    gx = fx.astype(gram_dtype)
    gy = fy.astype(gram_dtype)
    dn = (((1,), (1,)), ((), ()))
    gram_ref[...] += jax.lax.dot_general(gx, gx, dn,
                                         preferred_element_type=jnp.float32)
    gram_ref[...] -= jax.lax.dot_general(gy, gy, dn,
                                         preferred_element_type=jnp.float32)

    @pl.when(k == pl.num_programs(0) - 1)
    def _():
        dmat = gram_ref[...]
        style_ref[...] = jnp.sum(dmat * dmat, keepdims=True) * scale
        l1_ref[...] = jnp.sum(l1_acc_ref[...], keepdims=True) * inv_n


def fused_l1_style_loss(x, y, *, gram_operand_dtype=jnp.float32):
    """Returns (L1Loss(x, y), StyleLoss(x, y)) from a single HBM pass."""
    assert x.shape == y.shape
    a, b, c, d = x.shape
    m, kdim = a * b, c * d
    total = float(a * b * c * d)
    fx, fy = _flatten(x), _flatten(y)

    acc_bytes = m * m * 4
    tk = _choose_tk(m, kdim, acc_bytes)
    scale = (1.0 / total) ** 2 / float(m * m) * 30000000.0
    kernel = functools.partial(_fused_kernel, kdim=kdim, tk=tk,
                               inv_n=1.0 / total, scale=scale,
                               gram_dtype=gram_operand_dtype)

    l1_out, style_out = pl.pallas_call(
        kernel,
        out_shape=(jax.ShapeDtypeStruct((1, 1), jnp.float32),
                   jax.ShapeDtypeStruct((1, 1), jnp.float32)),
        grid_spec=pltpu.PrefetchScalarGridSpec(
            num_scalar_prefetch=0,
            grid=(pl.cdiv(kdim, tk),),
            in_specs=[pl.BlockSpec((m, tk), lambda k: (0, k)),
                      pl.BlockSpec((m, tk), lambda k: (0, k))],
            out_specs=[pl.BlockSpec((1, 1), lambda k: (0, 0)),
                       pl.BlockSpec((1, 1), lambda k: (0, 0))],
            scratch_shapes=[pltpu.VMEM((m, m), jnp.float32),
                            pltpu.VMEM((1, tk), jnp.float32)],
        ),
        compiler_params=pltpu.CompilerParams(
            dimension_semantics=("arbitrary",),
            vmem_limit_bytes=_vmem_limit(m, tk, acc_bytes),
        ),
    )(fx, fy)
    return l1_out[0, 0], style_out[0, 0]


# ----------------------------------------------------------------------------
# VGGLoss.forward over precomputed VGG feature maps
# ----------------------------------------------------------------------------
def vgg_loss(x_feats, y_feats, *, weights=None, style_weights=None, style=False,
             gram_operand_dtype=jnp.float32):
    """Mirrors VGGLoss.forward, given precomputed lists of feature maps."""
    n = len(x_feats)
    if weights is None:
        weights = [1.0] * n
    if style_weights is None:
        style_weights = [1.0] * n
    if style:
        loss = jnp.float32(0.0)
        s_loss = jnp.float32(0.0)
        for i in range(n):
            # Fused kernel: one HBM pass over the pair feeds both losses.
            l1_i, s_i = fused_l1_style_loss(
                x_feats[i], y_feats[i], gram_operand_dtype=gram_operand_dtype)
            loss = loss + weights[i] * l1_i
            s_loss = s_loss + style_weights[i] * s_i
        return loss, s_loss
    loss = jnp.float32(0.0)
    for i in range(n):
        loss = loss + weights[i] * l1_loss(x_feats[i], y_feats[i])
    return loss


# ----------------------------------------------------------------------------
# Pure-JAX references
# ----------------------------------------------------------------------------
def _style_reference(x, y):
    a, b, c, d = x.shape
    fx = x.reshape(a * b, c * d)
    fy = y.reshape(a * b, c * d)
    gx = (fx @ fx.T) / (a * b * c * d)
    gy = (fy @ fy.T) / (a * b * c * d)
    return jnp.mean((gx - gy) ** 2) * 30000000.0


def _l1_reference(x, y):
    return jnp.mean(jnp.abs(x - y))


if __name__ == "__main__":
    key = jax.random.PRNGKey(0)
    # Small stand-in "VGG feature maps" (NCHW).  (2,4,10,10) -> K=100 exercises
    # the K<128 full-width-block path; (2,4,20,20) -> K=400 exercises the
    # multi-step grid with a ragged, in-kernel-masked last K tile.
    shapes = [(2, 4, 16, 16), (2, 8, 8, 8), (2, 4, 10, 10), (2, 4, 20, 20)]
    keys = jax.random.split(key, 2 * len(shapes))
    x_feats = [jax.random.normal(keys[2 * i], s, dtype=jnp.float32)
               for i, s in enumerate(shapes)]
    y_feats = [jax.random.normal(keys[2 * i + 1], s, dtype=jnp.float32)
               for i, s in enumerate(shapes)]

    # Standalone criterion kernels on a single feature map.
    loss_s = jax.block_until_ready(style_loss(x_feats[0], y_feats[0]))
    ref_s = _style_reference(x_feats[0], y_feats[0])
    assert jnp.allclose(loss_s, ref_s, rtol=1e-3, atol=1e-3), (loss_s, ref_s)

    loss_l1 = jax.block_until_ready(l1_loss(x_feats[0], y_feats[0]))
    ref_l1_0 = _l1_reference(x_feats[0], y_feats[0])
    assert jnp.allclose(loss_l1, ref_l1_0, rtol=1e-3, atol=1e-3), (loss_l1, ref_l1_0)

    # Ragged-K case (K=400 -> tk=384, masked tail) through the fused kernel.
    l1_r, s_r = fused_l1_style_loss(x_feats[3], y_feats[3])
    l1_r = jax.block_until_ready(l1_r)
    s_r = jax.block_until_ready(s_r)
    assert jnp.allclose(l1_r, _l1_reference(x_feats[3], y_feats[3]),
                        rtol=1e-3, atol=1e-3), (l1_r,)
    assert jnp.allclose(s_r, _style_reference(x_feats[3], y_feats[3]),
                        rtol=1e-3, atol=1e-3), (s_r,)

    # Full VGGLoss.forward(style=True) over the feature list (fused kernels).
    l1_total, style_total = vgg_loss(x_feats, y_feats, style=True)
    l1_total = jax.block_until_ready(l1_total)
    style_total = jax.block_until_ready(style_total)
    ref_l1 = sum(_l1_reference(x, y) for x, y in zip(x_feats, y_feats))
    ref_style = sum(_style_reference(x, y) for x, y in zip(x_feats, y_feats))
    assert jnp.allclose(l1_total, ref_l1, rtol=1e-3, atol=1e-3), (l1_total, ref_l1)
    assert jnp.allclose(style_total, ref_style, rtol=1e-3, atol=1e-3), (style_total, ref_style)

    # Non-style path (L1 only).
    l1_only = jax.block_until_ready(vgg_loss(x_feats, y_feats, style=False))
    assert jnp.allclose(l1_only, ref_l1, rtol=1e-3, atol=1e-3), (l1_only, ref_l1)

    print("KERNEL_OK")
</pallas_src>

<mosaic_0001>
module attributes {stable_mosaic.version = 11 : i64} {
  func.func @_style_kernel(%arg0: i32, %arg1: memref<8x256xf32, #tpu.memory_space<vmem>>, %arg2: memref<8x256xf32, #tpu.memory_space<vmem>>, %arg3: memref<1x1xf32, #tpu.memory_space<vmem>>, %arg4: memref<8x8xf32, #tpu.memory_space<vmem>>) attributes {dimension_semantics = [#tpu.dimension_semantics<arbitrary>], iteration_bounds = array<i64: 1>, scalar_prefetch = 0 : i64, scratch_operands = 1 : i64, tpu.core_type = #tpu.core_type<tc>, window_params = [{transform_indices = @transform_0, window_bounds = array<i64: 8, 256>}, {transform_indices = @transform_1, window_bounds = array<i64: 8, 256>}, {pipeline_mode = #tpu.pipeline_mode<synchronous>, transform_indices = @transform_2, window_bounds = array<i64: 1, 1>}]} {
    %c0_i32 = arith.constant 0 : i32
    %0 = arith.cmpi eq, %arg0, %c0_i32 : i32
    %1 = arith.extui %0 : i1 to i32
    %c0_i32_0 = arith.constant 0 : i32
    %2 = arith.cmpi ne, %1, %c0_i32_0 : i32
    scf.if %2 {
      %cst_15 = arith.constant 0.000000e+00 : f32
      %16 = vector.broadcast %cst_15 : f32 to vector<8x8xf32>
      %c0_16 = arith.constant 0 : index
      %c0_17 = arith.constant 0 : index
      %17 = vector.load %arg4[%c0_16, %c0_17] : memref<8x8xf32, #tpu.memory_space<vmem>>, vector<8x8xf32>
      tpu.vector_store %arg4[%c0_16, %c0_17], %16 {strides = array<i32>} : memref<8x8xf32, #tpu.memory_space<vmem>>, vector<8x8xf32>,
    } else {
    }
    %c0 = arith.constant 0 : index
    %c0_1 = arith.constant 0 : index
    %3 = vector.load %arg1[%c0, %c0_1] : memref<8x256xf32, #tpu.memory_space<vmem>>, vector<8x256xf32>
    %c0_2 = arith.constant 0 : index
    %c0_3 = arith.constant 0 : index
    %4 = vector.load %arg2[%c0_2, %c0_3] : memref<8x256xf32, #tpu.memory_space<vmem>>, vector<8x256xf32>
    %c0_4 = arith.constant 0 : index
    %c0_5 = arith.constant 0 : index
    %5 = vector.load %arg4[%c0_4, %c0_5] : memref<8x8xf32, #tpu.memory_space<vmem>>, vector<8x8xf32>
    %cst = arith.constant dense<0.000000e+00> : vector<8x8xf32>
    %6 = tpu.matmul %3, %3, %cst {dimension_numbers = #tpu.dot_dimension_numbers<[1], [1], [0], [0], [0, 0, 1, 0], [], []>} : vector<8x256xf32>, vector<8x256xf32>, vector<8x8xf32> -> vector<8x8xf32>
    %7 = arith.addf %5, %6 : vector<8x8xf32>
    %c0_6 = arith.constant 0 : index
    %c0_7 = arith.constant 0 : index
    %8 = vector.load %arg4[%c0_6, %c0_7] : memref<8x8xf32, #tpu.memory_space<vmem>>, vector<8x8xf32>
    tpu.vector_store %arg4[%c0_6, %c0_7], %7 {strides = array<i32>} : memref<8x8xf32, #tpu.memory_space<vmem>>, vector<8x8xf32>,
    %c0_8 = arith.constant 0 : index
    %c0_9 = arith.constant 0 : index
    %9 = vector.load %arg4[%c0_8, %c0_9] : memref<8x8xf32, #tpu.memory_space<vmem>>, vector<8x8xf32>
    %cst_10 = arith.constant dense<0.000000e+00> : vector<8x8xf32>
    %10 = tpu.matmul %4, %4, %cst_10 {dimension_numbers = #tpu.dot_dimension_numbers<[1], [1], [0], [0], [0, 0, 1, 0], [], []>} : vector<8x256xf32>, vector<8x256xf32>, vector<8x8xf32> -> vector<8x8xf32>
    %11 = arith.subf %9, %10 : vector<8x8xf32>
    %c0_11 = arith.constant 0 : index
    %c0_12 = arith.constant 0 : index
    %12 = vector.load %arg4[%c0_11, %c0_12] : memref<8x8xf32, #tpu.memory_space<vmem>>, vector<8x8xf32>
    tpu.vector_store %arg4[%c0_11, %c0_12], %11 {strides = array<i32>} : memref<8x8xf32, #tpu.memory_space<vmem>>, vector<8x8xf32>,
    %c0_i32_13 = arith.constant 0 : i32
    %13 = arith.cmpi eq, %arg0, %c0_i32_13 : i32
    %14 = arith.extui %13 : i1 to i32
    %c0_i32_14 = arith.constant 0 : i32
    %15 = arith.cmpi ne, %14, %c0_i32_14 : i32
    scf.if %15 {
      %c0_15 = arith.constant 0 : index
      %c0_16 = arith.constant 0 : index
      %16 = vector.load %arg4[%c0_15, %c0_16] : memref<8x8xf32, #tpu.memory_space<vmem>>, vector<8x8xf32>
      %17 = arith.mulf %16, %16 : vector<8x8xf32>
      %18 = vector.shape_cast %17 : vector<8x8xf32> to vector<1x8x8xf32>
      %cst_17 = arith.constant dense<0.000000e+00> : vector<1xf32>
      %19 = vector.multi_reduction <add>, %18, %cst_17 [1, 2] : vector<1x8x8xf32> to vector<1xf32>
      %20 = vector.shape_cast %19 : vector<1xf32> to vector<1x1x1xf32>
      %21 = vector.extract %20[0, 0, 0] : f32 from vector<1x1x1xf32>
      %22 = vector.broadcast %21 : f32 to vector<1x1xf32>
      %cst_18 = arith.constant 0.111758709 : f32
      %23 = vector.broadcast %cst_18 : f32 to vector<1x1xf32>
      %24 = arith.mulf %22, %23 : vector<1x1xf32>
      %c0_19 = arith.constant 0 : index
      %c0_20 = arith.constant 0 : index
      %25 = vector.load %arg3[%c0_19, %c0_20] : memref<1x1xf32, #tpu.memory_space<vmem>>, vector<1x1xf32>
      tpu.vector_store %arg3[%c0_19, %c0_20], %24 {strides = array<i32>} : memref<1x1xf32, #tpu.memory_space<vmem>>, vector<1x1xf32>,
    } else {
    }
    return
  }
  func.func @transform_0(%arg0: i32) -> (i32, i32) {
    %c0_i32 = arith.constant 0 : i32
    %c0_i32_0 = arith.constant 0 : i32
    return %c0_i32, %arg0 : i32, i32
  }
  func.func @transform_1(%arg0: i32) -> (i32, i32) {
    %c0_i32 = arith.constant 0 : i32
    %c0_i32_0 = arith.constant 0 : i32
    return %c0_i32, %arg0 : i32, i32
  }
  func.func @transform_2(%arg0: i32) -> (i32, i32) {
    %c0_i32 = arith.constant 0 : i32
    %c0_i32_0 = arith.constant 0 : i32
    %c0_i32_1 = arith.constant 0 : i32
    return %c0_i32, %c0_i32_0 : i32, i32
  }
}

</mosaic_0001>

<llo_original>
// kernel: tpu_custom_call.1
$region0: #{tpu_custom_call.1}
  #allocation0 [shape = 'u32[]', space=smem, size = 0x4, offset = 0x4, fixed_abs, tag = 'smem constant byte address 0x4 - core index']
  #allocation1 [shape = 'u32[144,128]{1,0:T(1,128)}', space=vmem, size = 0x12000, scoped, tag = 'internal scratch']
  #allocation2 [shape = 'f32[8,8]{1,0:T(8,128)}', space=vmem, size = 0x1000, scoped, tag = 'scratch operand']
  %s0 = inlined_call_operand.hbm [shape: f32[8,256], index: 0, kind: input, shape index: {}]
  %s1 = inlined_call_operand.hbm [shape: f32[8,256], index: 1, kind: input, shape index: {}]
  %s2 = inlined_call_operand.hbm [shape: f32[1,1], index: 2, kind: output, shape index: {}]
  %s3 = sld [smem:[#allocation0]]
  $region34: #{tpu_custom_call.1} parent=0
    _
  %s5 = ssub.s32 1, %s3
  %s6 = scalar_select 0, %s5, %s3
  $region1: #{tpu_custom_call.1} parent=0
    #allocation3 [shape = 'u8[8192]{0}', space=vmem, size = 0x2000, scoped, tag = 'input window, operand 0, single buffered']
    #allocation4 [shape = 's32[1]{0}', space=sflag, size = 0x4, scoped, tag = 'scoped memory for tpu_custom_call.1']
    #allocation5 [shape = 's32[1]{0}', space=sflag, size = 0x4, scoped, tag = 'scoped memory for tpu_custom_call.1']
    #allocation6 [shape = 'u8[8192]{0}', space=vmem, size = 0x2000, scoped, tag = 'input window, operand 1, single buffered']
    #allocation7 [shape = 's32[1]{0}', space=sflag, size = 0x4, scoped, tag = 'scoped memory for tpu_custom_call.1']
    #allocation8 [shape = 'u8[512]{0}', space=vmem, size = 0x400, scoped, tag = 'output window, operand 0, single buffered']
    %7 = vsyncpa [#allocation4], 0
    %8 = vsyncpa [#allocation7], 0
    %9 = vsyncpa [#allocation5], 0
    // Predicated region
    $region2: #{tpu_custom_call.1} parent=1 // pred_check
      _
    $region3: #{tpu_custom_call.1} parent=1 // pred_check_branch
      %11 = sbr.rel (0) target = $region5
    $region4: #{tpu_custom_call.1} parent=1 // pred_region
      %s13 = ssub.s32 256, 256
      %14 = vsyncadd [#allocation4], %s13
      %s16 = sshll.u32 [#allocation3], 4
      %s17 = int_to_ptr.vmem [resolvable:$true] %s16
      %19 = dma.hbm_to_vmem [thread:$0]  %s0, 256, %s17, [#allocation4]
    $region5: #{tpu_custom_call.1} parent=1 // pred_fallthru
      _
    // Predicated region
    $region6: #{tpu_custom_call.1} parent=1 // pred_check
      _
    $region7: #{tpu_custom_call.1} parent=1 // pred_check_branch
      %21 = sbr.rel (0) target = $region9
    $region8: #{tpu_custom_call.1} parent=1 // pred_region
      %s23 = ssub.s32 256, 256
      %24 = vsyncadd [#allocation7], %s23
      %s26 = sshll.u32 [#allocation6], 4
      %s27 = int_to_ptr.vmem [resolvable:$true] %s26
      %29 = dma.hbm_to_vmem [thread:$0]  %s1, 256, %s27, [#allocation7]
    $region9: #{tpu_custom_call.1} parent=1 // pred_fallthru
      _
    // Predicated region
    $region10: #{tpu_custom_call.1} parent=1 // pred_check
      _
    $region11: #{tpu_custom_call.1} parent=1 // pred_check_branch
      %31 = sbr.rel (0) target = $region13
    $region12: #{tpu_custom_call.1} parent=1 // pred_region
      %32 = dma.done [#allocation4], 256
    $region13: #{tpu_custom_call.1} parent=1 // pred_fallthru
      _
    // Predicated region
    $region14: #{tpu_custom_call.1} parent=1 // pred_check
      _
    $region15: #{tpu_custom_call.1} parent=1 // pred_check_branch
      %34 = sbr.rel (0) target = $region17
    $region16: #{tpu_custom_call.1} parent=1 // pred_region
      %35 = dma.done [#allocation7], 256
    $region17: #{tpu_custom_call.1} parent=1 // pred_fallthru
      _
    %p36 = scmp.eq.s32.totalorder 0, 0
    // Predicated region
    $region18: #{tpu_custom_call.1} parent=1 // pred_check
      %p37 = pneg %p36
    $region19: #{tpu_custom_call.1} parent=1 // pred_check_branch
      %39 = sbr.rel (%p37) target = $region21
    $region20: #{tpu_custom_call.1} parent=1 // pred_region
      %vm40 = vcmask 64512
      %41 = vst.msk [vmem:[#allocation2] sm:$0xff] %vm40, 0.0
    $region21: #{tpu_custom_call.1} parent=1 // pred_fallthru
      _
    %v42 = vld [vmem:[#allocation3] sm:$0xff]
    %v43 = vld [vmem:[#allocation3 + $0x8] sm:$0xff]
    %v44 = vld [vmem:[#allocation6] sm:$0xff]
    %v45 = vld [vmem:[#allocation6 + $0x8] sm:$0xff]
    %v46 = vld [vmem:[#allocation2] sm:$0xff]
    %47 = vmatprep.subr.mxu0 %v43
    %48 = vmatpush1.xpose.msra.mxu0 %v42
    %49 = vmatprep.subr.mxu0 0.0
    %50 = vmatpush1.xpose.msra.mxu0 0.0
    %51 = vmatprep.subr.mxu0 0.0
    %52 = vmatpush1.xpose.msra.mxu0 0.0
    %53 = vmatprep.subr.mxu0 0.0
    %54 = vmatpush1.xpose.msra.mxu0 0.0
    %55 = vmatprep.subr.mxu0 0.0
    %56 = vmatpush1.xpose.msra.mxu0 0.0
    %57 = vmatprep.subr.mxu0 0.0
    %58 = vmatpush1.xpose.msra.mxu0 0.0
    %59 = vmatprep.subr.mxu0 0.0
    %60 = vmatpush1.xpose.msra.mxu0 0.0
    %61 = vmatprep.subr.mxu0 0.0
    %62 = vmatpush1.xpose.msra.mxu0 0.0
    %63 = vmatprep.subr.mxu0 0.0
    %64 = vmatpush1.xpose.msra.mxu0 0.0
    %65 = vmatprep.subr.mxu0 0.0
    %66 = vmatpush1.xpose.msra.mxu0 0.0
    %67 = vmatprep.subr.mxu0 0.0
    %68 = vmatpush1.xpose.msra.mxu0 0.0
    %69 = vmatprep.subr.mxu0 0.0
    %70 = vmatpush1.xpose.msra.mxu0 0.0
    %71 = vmatprep.subr.mxu0 0.0
    %72 = vmatpush1.xpose.msra.mxu0 0.0
    %73 = vmatprep.subr.mxu0 0.0
    %74 = vmatpush1.xpose.msra.mxu0 0.0
    %75 = vmatprep.subr.mxu0 0.0
    %76 = vmatpush1.xpose.msra.mxu0 0.0
    %77 = vmatprep.subr.mxu0 0.0
    %78 = vmatpush1.xpose.msra.mxu0 0.0
    %79 = vmatprep.subr.mxu0 0.0
    %80 = vmatpush1.xpose.msra.mxu0 0.0
    %81 = vmatprep.subr.mxu0 0.0
    %82 = vmatpush1.xpose.msra.mxu0 0.0
    %83 = vmatprep.subr.mxu0 0.0
    %84 = vmatpush1.xpose.msra.mxu0 0.0
    %85 = vmatprep.subr.mxu0 0.0
    %86 = vmatpush1.xpose.msra.mxu0 0.0
    %87 = vmatprep.subr.mxu0 0.0
    %88 = vmatpush1.xpose.msra.mxu0 0.0
    %89 = vmatprep.subr.mxu0 0.0
    %90 = vmatpush1.xpose.msra.mxu0 0.0
    %91 = vmatprep.subr.mxu0 0.0
    %92 = vmatpush1.xpose.msra.mxu0 0.0
    %93 = vmatprep.subr.mxu0 0.0
    %94 = vmatpush1.xpose.msra.mxu0 0.0
    %95 = vmatprep.subr.mxu0 0.0
    %96 = vmatpush1.xpose.msra.mxu0 0.0
    %97 = vmatprep.subr.mxu0 0.0
    %98 = vmatpush1.xpose.msra.mxu0 0.0
    %99 = vmatprep.subr.mxu0 0.0
    %100 = vmatpush1.xpose.msra.mxu0 0.0
    %101 = vmatprep.subr.mxu0 0.0
    %102 = vmatpush1.xpose.msra.mxu0 0.0
    %103 = vmatprep.subr.mxu0 0.0
    %104 = vmatpush1.xpose.msra.mxu0 0.0
    %105 = vmatprep.subr.mxu0 0.0
    %106 = vmatpush1.xpose.msra.mxu0 0.0
    %107 = vmatprep.subr.mxu0 0.0
    %108 = vmatpush1.xpose.msra.mxu0 0.0
    %109 = vmatprep.subr.mxu0 0.0
    %110 = vmatpush1.xpose.msra.mxu0 0.0
    %111 = vmatprep.mubr.f32.mxu0 %v43
    %112 = vmatmul.mubr.f32.gmra.mrb[0].mxu0 %v42
    %v113 = vpop.f32.mrb[0].mxu0
    %v114 = vadd.f32 0.0, %v113
    %v115 = vpop.f32.mrb[0].mxu0
    %116 = vdwg.mxu0
    %v117 = vadd.f32 %v46, %v114
    %vm118 = vcmask 64512
    %119 = vst.msk [vmem:[#allocation2] sm:$0xff] %vm118, %v117
    %v120 = vld [vmem:[#allocation2] sm:$0xff]
    %121 = vmatprep.subr.mxu0 %v45
    %122 = vmatpush1.xpose.msra.mxu0 %v44
    %123 = vmatprep.subr.mxu0 0.0
    %124 = vmatpush1.xpose.msra.mxu0 0.0
    %125 = vmatprep.subr.mxu0 0.0
    %126 = vmatpush1.xpose.msra.mxu0 0.0
    %127 = vmatprep.subr.mxu0 0.0
    %128 = vmatpush1.xpose.msra.mxu0 0.0
    %129 = vmatprep.subr.mxu0 0.0
    %130 = vmatpush1.xpose.msra.mxu0 0.0
    %131 = vmatprep.subr.mxu0 0.0
    %132 = vmatpush1.xpose.msra.mxu0 0.0
    %133 = vmatprep.subr.mxu0 0.0
    %134 = vmatpush1.xpose.msra.mxu0 0.0
    %135 = vmatprep.subr.mxu0 0.0
    %136 = vmatpush1.xpose.msra.mxu0 0.0
    %137 = vmatprep.subr.mxu0 0.0
    %138 = vmatpush1.xpose.msra.mxu0 0.0
    %139 = vmatprep.subr.mxu0 0.0
    %140 = vmatpush1.xpose.msra.mxu0 0.0
    %141 = vmatprep.subr.mxu0 0.0
    %142 = vmatpush1.xpose.msra.mxu0 0.0
    %143 = vmatprep.subr.mxu0 0.0
    %144 = vmatpush1.xpose.msra.mxu0 0.0
    %145 = vmatprep.subr.mxu0 0.0
    %146 = vmatpush1.xpose.msra.mxu0 0.0
    %147 = vmatprep.subr.mxu0 0.0
    %148 = vmatpush1.xpose.msra.mxu0 0.0
    %149 = vmatprep.subr.mxu0 0.0
    %150 = vmatpush1.xpose.msra.mxu0 0.0
    %151 = vmatprep.subr.mxu0 0.0
    %152 = vmatpush1.xpose.msra.mxu0 0.0
    %153 = vmatprep.subr.mxu0 0.0
    %154 = vmatpush1.xpose.msra.mxu0 0.0
    %155 = vmatprep.subr.mxu0 0.0
    %156 = vmatpush1.xpose.msra.mxu0 0.0
    %157 = vmatprep.subr.mxu0 0.0
    %158 = vmatpush1.xpose.msra.mxu0 0.0
    %159 = vmatprep.subr.mxu0 0.0
    %160 = vmatpush1.xpose.msra.mxu0 0.0
    %161 = vmatprep.subr.mxu0 0.0
    %162 = vmatpush1.xpose.msra.mxu0 0.0
    %163 = vmatprep.subr.mxu0 0.0
    %164 = vmatpush1.xpose.msra.mxu0 0.0
    %165 = vmatprep.subr.mxu0 0.0
    %166 = vmatpush1.xpose.msra.mxu0 0.0
    %167 = vmatprep.subr.mxu0 0.0
    %168 = vmatpush1.xpose.msra.mxu0 0.0
    %169 = vmatprep.subr.mxu0 0.0
    %170 = vmatpush1.xpose.msra.mxu0 0.0
    %171 = vmatprep.subr.mxu0 0.0
    %172 = vmatpush1.xpose.msra.mxu0 0.0
    %173 = vmatprep.subr.mxu0 0.0
    %174 = vmatpush1.xpose.msra.mxu0 0.0
    %175 = vmatprep.subr.mxu0 0.0
    %176 = vmatpush1.xpose.msra.mxu0 0.0
    %177 = vmatprep.subr.mxu0 0.0
    %178 = vmatpush1.xpose.msra.mxu0 0.0
    %179 = vmatprep.subr.mxu0 0.0
    %180 = vmatpush1.xpose.msra.mxu0 0.0
    %181 = vmatprep.subr.mxu0 0.0
    %182 = vmatpush1.xpose.msra.mxu0 0.0
    %183 = vmatprep.subr.mxu0 0.0
    %184 = vmatpush1.xpose.msra.mxu0 0.0
    %185 = vmatprep.mubr.f32.mxu0 %v45
    %186 = vmatmul.mubr.f32.gmra.mrb[0].mxu0 %v44
    %v187 = vpop.f32.mrb[0].mxu0
    %v188 = vadd.f32 0.0, %v187
    %v189 = vpop.f32.mrb[0].mxu0
    %190 = vdwg.mxu0
    %v191 = vsub.f32 %v120, %v188
    %192 = vst.msk [vmem:[#allocation2] sm:$0xff] %vm118, %v191
    // Predicated region
    $region22: #{tpu_custom_call.1} parent=1 // pred_check
      %p193 = pneg %p36
    $region23: #{tpu_custom_call.1} parent=1 // pred_check_branch
      %195 = sbr.rel (%p193) target = $region25
    $region24: #{tpu_custom_call.1} parent=1 // pred_region
      %v196 = vld [vmem:[#allocation2] sm:$0xff]
      %v197 = vmul.f32 %v196, %v196
      %v198 = vsel %vm118, %v197, 0.0
      %199 = vadd.xlane.f32.xlu0 %v198
      %v200 = vpop.xlane.xlu0 %199
      %v201 = vrot.slane %v200, 4
      %v202 = vadd.f32 %v200, %v201
      %v203 = vrot.slane %v202, 2
      %v204 = vadd.f32 %v202, %v203
      %v205 = vrot.slane %v204, 1
      %v206 = vadd.f32 %v204, %v205
      %s207 = vtos %v206
      %v208 = vstv %s207
      %v209 = vmul.f32 %v208, 0.11175871
      %vm210 = vcmask 0
      %211 = vst.msk [vmem:[#allocation8] sm:$0x1] %vm210, %v209
    $region25: #{tpu_custom_call.1} parent=1 // pred_fallthru
      _
    // Predicated region
    $region26: #{tpu_custom_call.1} parent=1 // pred_check
      _
    $region27: #{tpu_custom_call.1} parent=1 // pred_check_branch
      %213 = sbr.rel (0) target = $region29
    $region28: #{tpu_custom_call.1} parent=1 // pred_region
      %s215 = ssub.s32 16, 16
      %216 = vsyncadd [#allocation5], %s215
      %s218 = sshll.u32 [#allocation8], 4
      %s219 = int_to_ptr.vmem [resolvable:$true] %s218
      %221 = dma.vmem_to_hbm [thread:$0]  %s219, 16, %s2, [#allocation5]
    $region29: #{tpu_custom_call.1} parent=1 // pred_fallthru
      _
    // Predicated region
    $region30: #{tpu_custom_call.1} parent=1 // pred_check
      _
    $region31: #{tpu_custom_call.1} parent=1 // pred_check_branch
      %223 = sbr.rel (0) target = $region33
    $region32: #{tpu_custom_call.1} parent=1 // pred_region
      %224 = dma.done [#allocation5], 16
    $region33: #{tpu_custom_call.1} parent=1 // pred_fallthru
      _
    %225 = vsyncpa [#allocation4], 1
    %226 = vsyncpa [#allocation7], 1
    %227 = vsyncpa [#allocation5], 1

</llo_original>
